<compile_context>
chip_gen: v5e
topology: v5e:2x2
jax: 0.10.0
libtpu: 0.0.40
codegen_flags: <defaults>
</compile_context>

<pallas_src>
import functools

import jax
import jax.numpy as jnp
from jax.experimental import pallas as pl
from jax.experimental.pallas import tpu as pltpu

EPS = 1e-5

# 1x1-conv (GEMM) tile targets: a 512x512x1024 bf16 step amortizes the ~0.35us
# per-grid-step overhead and keeps the per-step footprint < ~15 MiB even with
# the fused shortcut operands, which is safe at vmem_limit_bytes=48MiB on
# v5e/v6e/v7x.
BM_TARGET = 512
BN_TARGET = 512
BK_TARGET = 1024
# 3x3 implicit-GEMM targets: output-channel tile and per-step matmul M rows.
CONV_BN_TARGET = 256
CONV_M_TARGET = 256

VMEM_LIMIT = 48 * 1024 * 1024


# --------------------------------------------------------------------------
# helpers
# --------------------------------------------------------------------------
def _round_up(x, m):
    return (x + m - 1) // m * m


def _pick_n_tile(cout, target):
    """Lane-dense output tile: >=128 and a multiple of 128 (or one padded block)."""
    npad = _round_up(max(cout, 128), 128)
    if npad <= target:
        return npad, npad
    tile = (target // 128) * 128
    return tile, _round_up(cout, tile)


def _pick_k_tile(k, target):
    if k <= target:
        return k, k
    return target, _round_up(k, target)


def _pick_row_block(ho, wo, target_m):
    """Smallest divisor TH of Ho with TH*Wo >= target_m (full Ho if none).
    Falls back to 1 when Wo is not sublane-aligned so the in-kernel row
    collapse stays layout-preserving."""
    if wo % 8 != 0:
        return 1
    for th in range(1, ho + 1):
        if ho % th == 0 and th * wo >= target_m:
            return th
    return ho


# --------------------------------------------------------------------------
# Pallas kernels
# --------------------------------------------------------------------------
def _matmul_bn_kernel(a_ref, b_ref, shift_ref, *rest, apply_relu, has_aux):
    """(bm, bk) @ (bk, bn) accumulated over the K grid axis into a VMEM f32
    scratch; epilogue: + shift (folded BN), optional fused second GEMM
    (projection shortcut), optional ReLU."""
    if has_aux:
        a2_ref, b2_ref, o_ref, acc_ref = rest
    else:
        o_ref, acc_ref = rest

    @pl.when(pl.program_id(2) == 0)
    def _():
        acc_ref[...] = jnp.zeros_like(acc_ref)

    acc_ref[...] += jnp.dot(a_ref[...], b_ref[...],
                            preferred_element_type=jnp.float32)

    @pl.when(pl.program_id(2) == pl.num_programs(2) - 1)
    def _():
        out = acc_ref[...] + shift_ref[...]
        if has_aux:
            out = out + jnp.dot(a2_ref[...], b2_ref[...],
                                preferred_element_type=jnp.float32)
        if apply_relu:
            out = jnp.maximum(out, 0.0)
        o_ref[...] = out.astype(o_ref.dtype)


def _conv3x3_kernel(x_ref, w_ref, shift_ref, o_ref, acc_ref, *, stride, th, hq_len):
    """Implicit-GEMM 3x3 conv: per grid step compute TH output rows
    (TH*Wo, bn) for sample n / cout block j / row block t by accumulating 9
    shifted (TH*Wo, Cin) x (Cin, bn) bf16 matmuls into a VMEM f32 scratch.

    x_ref : (1, S*Hq, S, Wq, Cin) with
            x_ref[0, ph*Hq + hq, pw, wq, :] == x_pad[n, hq*S+ph, wq*S+pw, :]
    w_ref : (9, Cin, bn) tap-major (dy*3+dx), BN scale already folded in
    """
    t = pl.program_id(2)
    wo = o_ref.shape[2]
    cin = x_ref.shape[-1]

    acc_ref[...] = jnp.zeros_like(acc_ref)
    for dy in range(3):
        row0 = (dy % stride) * hq_len + dy // stride     # H phase block + offset
        for dx in range(3):
            pw, wq0 = dx % stride, dx // stride          # W phase, in-phase start
            a = x_ref[0, pl.ds(row0 + t * th, th), pw, pl.ds(wq0, wo), :]
            acc_ref[...] += jnp.dot(a.reshape(th * wo, cin),
                                    w_ref[dy * 3 + dx],
                                    preferred_element_type=jnp.float32)

    out = jnp.maximum(acc_ref[...] + shift_ref[...], 0.0)
    o_ref[...] = out.reshape(o_ref.shape).astype(o_ref.dtype)


# --------------------------------------------------------------------------
# Pallas wrappers
# --------------------------------------------------------------------------
def matmul_bn(a, b, shift, *, relu, aux=None, out_dtype=jnp.bfloat16):
    """out = [relu](a @ b + shift [+ a2 @ b2]).

    a:(M,K) activations (bf16 MXU), b:(K,Cout) weights, shift:(Cout,) f32,
    aux=(a2:(M,K2), b2:(K2,Cout)) fused second GEMM (projection shortcut).
    M: cdiv grid (masked partial blocks, no host padding).  K: zero-padded only
    when it does not divide the K tile.  Cout: padded to a lane-dense multiple
    of 128 and sliced after.
    """
    M, K = a.shape
    Cout = b.shape[1]
    bm = M if M <= BM_TARGET else BM_TARGET
    bk, Kp = _pick_k_tile(K, BK_TARGET)
    bn, Np = _pick_n_tile(Cout, BN_TARGET)

    a_in = a.astype(jnp.bfloat16)
    if Kp != K:
        a_in = jnp.pad(a_in, ((0, 0), (0, Kp - K)))
    b_in = jnp.pad(b.astype(jnp.bfloat16), ((0, Kp - K), (0, Np - Cout)))
    sh_in = jnp.pad(shift.reshape(1, Cout).astype(jnp.float32),
                    ((0, 0), (0, Np - Cout)))

    inputs = [a_in, b_in, sh_in]
    in_specs = [
        pl.BlockSpec((bm, bk), lambda i, j, k: (i, k)),
        pl.BlockSpec((bk, bn), lambda i, j, k: (k, j)),
        pl.BlockSpec((1, bn), lambda i, j, k: (0, j)),
    ]
    has_aux = aux is not None
    if has_aux:
        a2, b2 = aux
        K2 = a2.shape[1]
        inputs.append(a2.astype(jnp.bfloat16))
        inputs.append(jnp.pad(b2.astype(jnp.bfloat16), ((0, 0), (0, Np - Cout))))
        in_specs.append(pl.BlockSpec((bm, K2), lambda i, j, k: (i, 0)))
        in_specs.append(pl.BlockSpec((K2, bn), lambda i, j, k: (0, j)))

    kernel = functools.partial(_matmul_bn_kernel, apply_relu=relu, has_aux=has_aux)
    out = pl.pallas_call(
        kernel,
        out_shape=jax.ShapeDtypeStruct((M, Np), out_dtype),
        grid=(pl.cdiv(M, bm), Np // bn, Kp // bk),
        in_specs=in_specs,
        out_specs=pl.BlockSpec((bm, bn), lambda i, j, k: (i, j)),
        scratch_shapes=[pltpu.VMEM((bm, bn), jnp.float32)],
        compiler_params=pltpu.CompilerParams(
            dimension_semantics=("parallel", "parallel", "arbitrary"),
            vmem_limit_bytes=VMEM_LIMIT),
    )(*inputs)
    if Np != Cout:
        out = out[:, :Cout]
    return out


def conv1x1_bn(x_nhwc, w_2d, shift, *, relu, aux=None, out_dtype=jnp.bfloat16):
    """1x1 conv (stride handled by the caller) + folded BN (+ fused shortcut)."""
    N, H, W, Cin = x_nhwc.shape
    Cout = w_2d.shape[1]
    a = x_nhwc.reshape(N * H * W, Cin)
    out = matmul_bn(a, w_2d, shift, relu=relu, aux=aux, out_dtype=out_dtype)
    return out.reshape(N, H, W, Cout)


def _phase_split(x_nhwc, s):
    """Zero-pad by 1 per spatial side and split H and W into `s` stride phases:
    returns x5 of shape (N, s*Hq, s, Wq, C) with
      x5[n, ph*Hq + hq, pw, wq, c] == x_pad[n, hq*s+ph, wq*s+pw, c]
    so stride-s row/col subsampling becomes contiguous slices."""
    N, H, W, C = x_nhwc.shape
    Hp, Wp = H + 2, W + 2
    Hq, Wq = -(-Hp // s), -(-Wp // s)
    xp = jnp.pad(x_nhwc,
                 ((0, 0), (1, 1 + Hq * s - Hp), (1, 1 + Wq * s - Wp), (0, 0)))
    x6 = xp.reshape(N, Hq, s, Wq, s, C).transpose(0, 2, 1, 4, 3, 5)
    return x6.reshape(N, s * Hq, s, Wq, C), Hq, Wq


def conv3x3_bn_relu(x_nhwc, w_hwio, shift, *, stride, out_dtype=jnp.bfloat16):
    """3x3 conv, padding=1, stride=s, folded BN + ReLU via implicit GEMM."""
    N, H, W, Cin = x_nhwc.shape
    Cout = w_hwio.shape[-1]
    Ho = (H - 1) // stride + 1
    Wo = (W - 1) // stride + 1

    x5, Hq, Wq = _phase_split(x_nhwc.astype(jnp.bfloat16), stride)
    S = stride

    bn_, Np = _pick_n_tile(Cout, CONV_BN_TARGET)
    w = jnp.pad(w_hwio.reshape(9, Cin, Cout).astype(jnp.bfloat16),
                ((0, 0), (0, 0), (0, Np - Cout)))
    sh = jnp.pad(shift.reshape(1, Cout).astype(jnp.float32),
                 ((0, 0), (0, Np - Cout)))

    th = _pick_row_block(Ho, Wo, CONV_M_TARGET)

    kernel = functools.partial(_conv3x3_kernel, stride=stride, th=th, hq_len=Hq)
    out = pl.pallas_call(
        kernel,
        out_shape=jax.ShapeDtypeStruct((N, Ho, Wo, Np), out_dtype),
        grid=(N, Np // bn_, Ho // th),
        in_specs=[
            pl.BlockSpec((1, S * Hq, S, Wq, Cin), lambda n, j, t: (n, 0, 0, 0, 0)),
            pl.BlockSpec((9, Cin, bn_), lambda n, j, t: (0, 0, j)),
            pl.BlockSpec((1, bn_), lambda n, j, t: (0, j)),
        ],
        out_specs=pl.BlockSpec((1, th, Wo, bn_), lambda n, j, t: (n, t, 0, j)),
        scratch_shapes=[pltpu.VMEM((th * Wo, bn_), jnp.float32)],
        compiler_params=pltpu.CompilerParams(
            dimension_semantics=("parallel", "parallel", "parallel"),
            vmem_limit_bytes=VMEM_LIMIT),
    )(x5, w, sh)
    if Np != Cout:
        out = out[..., :Cout]
    return out


# --------------------------------------------------------------------------
# BN folding (inference): conv-bias + BN -> (scaled weights, shift)
# --------------------------------------------------------------------------
def fold_bn_into_weights(p):
    scale = p["gamma"] / jnp.sqrt(p["var"] + EPS)
    shift = p["beta"] + (p["b"] - p["mean"]) * scale
    w = (p["w"] * scale).astype(jnp.bfloat16)     # HWIO; scale broadcasts on Cout
    return w, shift.astype(jnp.float32)


# --------------------------------------------------------------------------
# Parameter construction (deterministic, synthetic)
# --------------------------------------------------------------------------
def make_conv_bn_params(key, kh, kw, cin, cout):
    kw_, kb_, kg_, kbeta_, km_, kv_ = jax.random.split(key, 6)
    return dict(
        w=jax.random.normal(kw_, (kh, kw, cin, cout), jnp.float32) * 0.1,  # HWIO
        b=jax.random.normal(kb_, (cout,), jnp.float32) * 0.1,
        gamma=1.0 + 0.1 * jax.random.normal(kg_, (cout,), jnp.float32),
        beta=0.1 * jax.random.normal(kbeta_, (cout,), jnp.float32),
        mean=0.1 * jax.random.normal(km_, (cout,), jnp.float32),
        var=jax.random.uniform(kv_, (cout,), jnp.float32, 0.5, 1.5),
    )


def init_convblock_params(key, in_channels, out_channels):
    expansion = 4
    k1, k2, k3, k4 = jax.random.split(key, 4)
    return dict(
        body1=make_conv_bn_params(k1, 1, 1, in_channels, out_channels),
        body2=make_conv_bn_params(k2, 3, 3, out_channels, out_channels),
        body3=make_conv_bn_params(k3, 1, 1, out_channels, expansion * out_channels),
        shortcut=make_conv_bn_params(k4, 1, 1, in_channels, expansion * out_channels),
    )


# --------------------------------------------------------------------------
# ConvBlock forward (Pallas)
# --------------------------------------------------------------------------
def convblock_forward(x_nchw, params, *, stride):
    x = jnp.transpose(x_nchw, (0, 2, 3, 1)).astype(jnp.bfloat16)   # NCHW -> NHWC

    p1, p2, p3, ps = (params["body1"], params["body2"],
                      params["body3"], params["shortcut"])

    # body: 1x1 -> 3x3(stride) -> 1x1 (+ fused shortcut GEMM, residual, ReLU)
    w1, sh1 = fold_bn_into_weights(p1)
    h = conv1x1_bn(x, w1.reshape(w1.shape[2], w1.shape[3]), sh1, relu=True)

    w2, sh2 = fold_bn_into_weights(p2)
    h = conv3x3_bn_relu(h, w2, sh2, stride=stride)

    # body3 1x1 + BN fused with the strided shortcut 1x1 + BN, residual add and
    # the final ReLU — a single GEMM kernel; x2 never hits HBM.
    w3, sh3 = fold_bn_into_weights(p3)
    ws, shs = fold_bn_into_weights(ps)
    xs = x[:, ::stride, ::stride, :] if stride > 1 else x
    N, Ho, Wo, Cin = xs.shape
    aux = (xs.reshape(N * Ho * Wo, Cin), ws.reshape(ws.shape[2], ws.shape[3]))

    out = conv1x1_bn(h, w3.reshape(w3.shape[2], w3.shape[3]), sh3 + shs,
                     relu=True, aux=aux, out_dtype=jnp.float32)
    return jnp.transpose(out, (0, 3, 1, 2))   # NHWC -> NCHW


# --------------------------------------------------------------------------
# Pure-JAX reference (for correctness check)
# --------------------------------------------------------------------------
def convblock_reference(x_nchw, params, *, stride):
    x = jnp.transpose(x_nchw, (0, 2, 3, 1)).astype(jnp.float32)

    def conv(x, w, b, st, pad):
        y = jax.lax.conv_general_dilated(
            x, w, (st, st), [(pad, pad), (pad, pad)],
            dimension_numbers=("NHWC", "HWIO", "NHWC"),
            precision=jax.lax.Precision.HIGHEST)
        return y + b

    def bn(x, p):
        return (x - p["mean"]) / jnp.sqrt(p["var"] + EPS) * p["gamma"] + p["beta"]

    p1, p2, p3, ps = (params["body1"], params["body2"],
                      params["body3"], params["shortcut"])
    h = jax.nn.relu(bn(conv(x, p1["w"], p1["b"], 1, 0), p1))
    h = jax.nn.relu(bn(conv(h, p2["w"], p2["b"], stride, 1), p2))
    x1 = bn(conv(h, p3["w"], p3["b"], 1, 0), p3)
    x2 = bn(conv(x, ps["w"], ps["b"], stride, 0), ps)
    out = jax.nn.relu(x1 + x2)
    return jnp.transpose(out, (0, 3, 1, 2))


# --------------------------------------------------------------------------
if __name__ == "__main__":
    in_channels, out_channels, stride = 4, 4, 2
    key = jax.random.PRNGKey(0)
    kx, kp = jax.random.split(key)

    x = jax.random.normal(kx, (2, in_channels, 16, 16), jnp.float32)  # NCHW
    params = init_convblock_params(kp, in_channels, out_channels)

    out = convblock_forward(x, params, stride=stride)
    out = jax.block_until_ready(out)

    ref = convblock_reference(x, params, stride=stride)
    assert out.shape == (2, 4 * out_channels, 16 // stride, 16 // stride), out.shape
    max_err = float(jnp.max(jnp.abs(out - ref)))
    # bf16 MXU inputs + bf16 intermediates -> relaxed (but meaningful) tolerance.
    assert jnp.allclose(out, ref, atol=5e-2, rtol=5e-2), max_err

    print("KERNEL_OK")
</pallas_src>

<mosaic_0001>
module attributes {stable_mosaic.version = 11 : i64} {
  func.func @_matmul_bn_kernel(%arg0: i32, %arg1: i32, %arg2: i32, %arg3: memref<512x4xbf16, #tpu.memory_space<vmem>>, %arg4: memref<4x128xbf16, #tpu.memory_space<vmem>>, %arg5: memref<1x128xf32, #tpu.memory_space<vmem>>, %arg6: memref<512x128xbf16, #tpu.memory_space<vmem>>, %arg7: memref<512x128xf32, #tpu.memory_space<vmem>>) attributes {dimension_semantics = [#tpu.dimension_semantics<parallel>, #tpu.dimension_semantics<parallel>, #tpu.dimension_semantics<arbitrary>], iteration_bounds = array<i64: 1, 1, 1>, scalar_prefetch = 0 : i64, scratch_operands = 1 : i64, tpu.core_type = #tpu.core_type<tc>, window_params = [{transform_indices = @transform_0, window_bounds = array<i64: 512, 4>}, {transform_indices = @transform_1, window_bounds = array<i64: 4, 128>}, {transform_indices = @transform_2, window_bounds = array<i64: 1, 128>}, {transform_indices = @transform_3, window_bounds = array<i64: 512, 128>}]} {
    %c0_i32 = arith.constant 0 : i32
    %0 = arith.cmpi eq, %arg2, %c0_i32 : i32
    %1 = arith.extui %0 : i1 to i32
    %c0_i32_0 = arith.constant 0 : i32
    %2 = arith.cmpi ne, %1, %c0_i32_0 : i32
    scf.if %2 {
      %cst_10 = arith.constant 0.000000e+00 : f32
      %12 = vector.broadcast %cst_10 : f32 to vector<512x128xf32>
      %c0_11 = arith.constant 0 : index
      %c0_12 = arith.constant 0 : index
      %13 = vector.load %arg7[%c0_11, %c0_12] : memref<512x128xf32, #tpu.memory_space<vmem>>, vector<512x128xf32>
      tpu.vector_store %arg7[%c0_11, %c0_12], %12 {strides = array<i32>} : memref<512x128xf32, #tpu.memory_space<vmem>>, vector<512x128xf32>,
    } else {
    }
    %c0 = arith.constant 0 : index
    %c0_1 = arith.constant 0 : index
    %3 = vector.load %arg7[%c0, %c0_1] : memref<512x128xf32, #tpu.memory_space<vmem>>, vector<512x128xf32>
    %c0_2 = arith.constant 0 : index
    %c0_3 = arith.constant 0 : index
    %4 = vector.load %arg3[%c0_2, %c0_3] : memref<512x4xbf16, #tpu.memory_space<vmem>>, vector<512x4xbf16>
    %c0_4 = arith.constant 0 : index
    %c0_5 = arith.constant 0 : index
    %5 = vector.load %arg4[%c0_4, %c0_5] : memref<4x128xbf16, #tpu.memory_space<vmem>>, vector<4x128xbf16>
    %cst = arith.constant dense<0.000000e+00> : vector<512x128xf32>
    %6 = tpu.matmul %4, %5, %cst {dimension_numbers = #tpu.dot_dimension_numbers<[1], [0], [0], [1], [0, 0, 1, 1], [], []>} : vector<512x4xbf16>, vector<4x128xbf16>, vector<512x128xf32> -> vector<512x128xf32>
    %7 = arith.addf %3, %6 : vector<512x128xf32>
    %c0_6 = arith.constant 0 : index
    %c0_7 = arith.constant 0 : index
    %8 = vector.load %arg7[%c0_6, %c0_7] : memref<512x128xf32, #tpu.memory_space<vmem>>, vector<512x128xf32>
    tpu.vector_store %arg7[%c0_6, %c0_7], %7 {strides = array<i32>} : memref<512x128xf32, #tpu.memory_space<vmem>>, vector<512x128xf32>,
    %c0_i32_8 = arith.constant 0 : i32
    %9 = arith.cmpi eq, %arg2, %c0_i32_8 : i32
    %10 = arith.extui %9 : i1 to i32
    %c0_i32_9 = arith.constant 0 : i32
    %11 = arith.cmpi ne, %10, %c0_i32_9 : i32
    scf.if %11 {
      %c0_10 = arith.constant 0 : index
      %c0_11 = arith.constant 0 : index
      %12 = vector.load %arg7[%c0_10, %c0_11] : memref<512x128xf32, #tpu.memory_space<vmem>>, vector<512x128xf32>
      %c0_12 = arith.constant 0 : index
      %c0_13 = arith.constant 0 : index
      %13 = vector.load %arg5[%c0_12, %c0_13] : memref<1x128xf32, #tpu.memory_space<vmem>>, vector<1x128xf32>
      %14 = vector.broadcast %13 : vector<1x128xf32> to vector<512x128xf32>
      %15 = arith.addf %12, %14 : vector<512x128xf32>
      %cst_14 = arith.constant 0.000000e+00 : f32
      %16 = vector.broadcast %cst_14 : f32 to vector<512x128xf32>
      %17 = arith.maximumf %15, %16 : vector<512x128xf32>
      %18 = arith.truncf %17 : vector<512x128xf32> to vector<512x128xbf16>
      %c0_15 = arith.constant 0 : index
      %c0_16 = arith.constant 0 : index
      %19 = vector.load %arg6[%c0_15, %c0_16] : memref<512x128xbf16, #tpu.memory_space<vmem>>, vector<512x128xbf16>
      tpu.vector_store %arg6[%c0_15, %c0_16], %18 {strides = array<i32>} : memref<512x128xbf16, #tpu.memory_space<vmem>>, vector<512x128xbf16>,
    } else {
    }
    return
  }
  func.func @transform_0(%arg0: i32, %arg1: i32, %arg2: i32) -> (i32, i32) {
    %c0_i32 = arith.constant 0 : i32
    return %arg0, %arg2 : i32, i32
  }
  func.func @transform_1(%arg0: i32, %arg1: i32, %arg2: i32) -> (i32, i32) {
    %c0_i32 = arith.constant 0 : i32
    return %arg2, %arg1 : i32, i32
  }
  func.func @transform_2(%arg0: i32, %arg1: i32, %arg2: i32) -> (i32, i32) {
    %c0_i32 = arith.constant 0 : i32
    %c0_i32_0 = arith.constant 0 : i32
    return %c0_i32, %arg1 : i32, i32
  }
  func.func @transform_3(%arg0: i32, %arg1: i32, %arg2: i32) -> (i32, i32) {
    %c0_i32 = arith.constant 0 : i32
    return %arg0, %arg1 : i32, i32
  }
}

</mosaic_0001>

<llo_original>
// kernel: tpu_custom_call.1
$region0: #{tpu_custom_call.1}
  #allocation0 [shape = 'u32[]', space=smem, size = 0x4, offset = 0x4, fixed_abs, tag = 'smem constant byte address 0x4 - core index']
  #allocation1 [shape = 'u32[72,128]{1,0:T(1,128)}', space=vmem, size = 0x9000, scoped, tag = 'internal scratch']
  #allocation2 [shape = 'f32[512,128]{1,0:T(8,128)}', space=vmem, size = 0x40000, scoped, tag = 'scratch operand']
  %s0 = inlined_call_operand.vmem [shape: bf16[512,4], index: 0, kind: input, shape index: {}]
  %s1 = inlined_call_operand.vmem [shape: bf16[4,128], index: 1, kind: input, shape index: {}]
  %s2 = inlined_call_operand.vmem [shape: f32[1,128], index: 2, kind: input, shape index: {}]
  %s3 = inlined_call_operand.hbm [shape: bf16[512,128], index: 3, kind: output, shape index: {}]
  %s4 = sld [smem:[#allocation0]]
  $region30: #{tpu_custom_call.1} parent=0
    _
  %s6 = ssub.s32 1, %s4
  %s7 = scalar_select 0, %s6, %s4
  $region1: #{tpu_custom_call.1} parent=0
    #allocation3 [shape = 'u8[131072]{0}', space=vmem, size = 0x20000, scoped, tag = 'output window, operand 0, single buffered']
    #allocation4 [shape = 's32[1]{0}', space=sflag, size = 0x4, scoped, tag = 'scoped memory for tpu_custom_call.1']
    %8 = vsyncpa [#allocation4], 0
    // Predicated region
    $region2: #{tpu_custom_call.1} parent=1 // pred_check
      _
    $region3: #{tpu_custom_call.1} parent=1 // pred_check_branch
      %10 = sbr.rel (0) target = $region5
    $region4: #{tpu_custom_call.1} parent=1 // pred_region
      _
    $region5: #{tpu_custom_call.1} parent=1 // pred_fallthru
      _
    // Predicated region
    $region6: #{tpu_custom_call.1} parent=1 // pred_check
      _
    $region7: #{tpu_custom_call.1} parent=1 // pred_check_branch
      %12 = sbr.rel (0) target = $region9
    $region8: #{tpu_custom_call.1} parent=1 // pred_region
      _
    $region9: #{tpu_custom_call.1} parent=1 // pred_fallthru
      _
    // Predicated region
    $region10: #{tpu_custom_call.1} parent=1 // pred_check
      _
    $region11: #{tpu_custom_call.1} parent=1 // pred_check_branch
      %14 = sbr.rel (0) target = $region13
    $region12: #{tpu_custom_call.1} parent=1 // pred_region
      _
    $region13: #{tpu_custom_call.1} parent=1 // pred_fallthru
      _
    %p16 = scmp.eq.s32.totalorder 0, 0
    // Predicated region
    $region14: #{tpu_custom_call.1} parent=1 // pred_check
      %p17 = pneg %p16
    $region15: #{tpu_custom_call.1} parent=1 // pred_check_branch
      %19 = sbr.rel (%p17) target = $region17
    $region16: #{tpu_custom_call.1} parent=1 // pred_region
      %20 = vst [vmem:[#allocation2] sm:$0xff] 0.0
      %21 = vst [vmem:[#allocation2 + $0x8] sm:$0xff] 0.0
      %22 = vst [vmem:[#allocation2 + $0x10] sm:$0xff] 0.0
      %23 = vst [vmem:[#allocation2 + $0x18] sm:$0xff] 0.0
      %24 = vst [vmem:[#allocation2 + $0x20] sm:$0xff] 0.0
      %25 = vst [vmem:[#allocation2 + $0x28] sm:$0xff] 0.0
      %26 = vst [vmem:[#allocation2 + $0x30] sm:$0xff] 0.0
      %27 = vst [vmem:[#allocation2 + $0x38] sm:$0xff] 0.0
      %28 = vst [vmem:[#allocation2 + $0x40] sm:$0xff] 0.0
      %29 = vst [vmem:[#allocation2 + $0x48] sm:$0xff] 0.0
      %30 = vst [vmem:[#allocation2 + $0x50] sm:$0xff] 0.0
      %31 = vst [vmem:[#allocation2 + $0x58] sm:$0xff] 0.0
      %32 = vst [vmem:[#allocation2 + $0x60] sm:$0xff] 0.0
      %33 = vst [vmem:[#allocation2 + $0x68] sm:$0xff] 0.0
      %34 = vst [vmem:[#allocation2 + $0x70] sm:$0xff] 0.0
      %35 = vst [vmem:[#allocation2 + $0x78] sm:$0xff] 0.0
      %36 = vst [vmem:[#allocation2 + $0x80] sm:$0xff] 0.0
      %37 = vst [vmem:[#allocation2 + $0x88] sm:$0xff] 0.0
      %38 = vst [vmem:[#allocation2 + $0x90] sm:$0xff] 0.0
      %39 = vst [vmem:[#allocation2 + $0x98] sm:$0xff] 0.0
      %40 = vst [vmem:[#allocation2 + $0xa0] sm:$0xff] 0.0
      %41 = vst [vmem:[#allocation2 + $0xa8] sm:$0xff] 0.0
      %42 = vst [vmem:[#allocation2 + $0xb0] sm:$0xff] 0.0
      %43 = vst [vmem:[#allocation2 + $0xb8] sm:$0xff] 0.0
      %44 = vst [vmem:[#allocation2 + $0xc0] sm:$0xff] 0.0
      %45 = vst [vmem:[#allocation2 + $0xc8] sm:$0xff] 0.0
      %46 = vst [vmem:[#allocation2 + $0xd0] sm:$0xff] 0.0
      %47 = vst [vmem:[#allocation2 + $0xd8] sm:$0xff] 0.0
      %48 = vst [vmem:[#allocation2 + $0xe0] sm:$0xff] 0.0
      %49 = vst [vmem:[#allocation2 + $0xe8] sm:$0xff] 0.0
      %50 = vst [vmem:[#allocation2 + $0xf0] sm:$0xff] 0.0
      %51 = vst [vmem:[#allocation2 + $0xf8] sm:$0xff] 0.0
      %52 = vst [vmem:[#allocation2 + $0x100] sm:$0xff] 0.0
      %53 = vst [vmem:[#allocation2 + $0x108] sm:$0xff] 0.0
      %54 = vst [vmem:[#allocation2 + $0x110] sm:$0xff] 0.0
      %55 = vst [vmem:[#allocation2 + $0x118] sm:$0xff] 0.0
      %56 = vst [vmem:[#allocation2 + $0x120] sm:$0xff] 0.0
      %57 = vst [vmem:[#allocation2 + $0x128] sm:$0xff] 0.0
      %58 = vst [vmem:[#allocation2 + $0x130] sm:$0xff] 0.0
      %59 = vst [vmem:[#allocation2 + $0x138] sm:$0xff] 0.0
      %60 = vst [vmem:[#allocation2 + $0x140] sm:$0xff] 0.0
      %61 = vst [vmem:[#allocation2 + $0x148] sm:$0xff] 0.0
      %62 = vst [vmem:[#allocation2 + $0x150] sm:$0xff] 0.0
      %63 = vst [vmem:[#allocation2 + $0x158] sm:$0xff] 0.0
      %64 = vst [vmem:[#allocation2 + $0x160] sm:$0xff] 0.0
      %65 = vst [vmem:[#allocation2 + $0x168] sm:$0xff] 0.0
      %66 = vst [vmem:[#allocation2 + $0x170] sm:$0xff] 0.0
      %67 = vst [vmem:[#allocation2 + $0x178] sm:$0xff] 0.0
      %68 = vst [vmem:[#allocation2 + $0x180] sm:$0xff] 0.0
      %69 = vst [vmem:[#allocation2 + $0x188] sm:$0xff] 0.0
      %70 = vst [vmem:[#allocation2 + $0x190] sm:$0xff] 0.0
      %71 = vst [vmem:[#allocation2 + $0x198] sm:$0xff] 0.0
      %72 = vst [vmem:[#allocation2 + $0x1a0] sm:$0xff] 0.0
      %73 = vst [vmem:[#allocation2 + $0x1a8] sm:$0xff] 0.0
      %74 = vst [vmem:[#allocation2 + $0x1b0] sm:$0xff] 0.0
      %75 = vst [vmem:[#allocation2 + $0x1b8] sm:$0xff] 0.0
      %76 = vst [vmem:[#allocation2 + $0x1c0] sm:$0xff] 0.0
      %77 = vst [vmem:[#allocation2 + $0x1c8] sm:$0xff] 0.0
      %78 = vst [vmem:[#allocation2 + $0x1d0] sm:$0xff] 0.0
      %79 = vst [vmem:[#allocation2 + $0x1d8] sm:$0xff] 0.0
      %80 = vst [vmem:[#allocation2 + $0x1e0] sm:$0xff] 0.0
      %81 = vst [vmem:[#allocation2 + $0x1e8] sm:$0xff] 0.0
      %82 = vst [vmem:[#allocation2 + $0x1f0] sm:$0xff] 0.0
      %83 = vst [vmem:[#allocation2 + $0x1f8] sm:$0xff] 0.0
    $region17: #{tpu_custom_call.1} parent=1 // pred_fallthru
      _
    %v84 = vld [vmem:[#allocation2] sm:$0xff]
    %v85 = vld [vmem:[#allocation2 + $0x8] sm:$0xff]
    %v86 = vld [vmem:[#allocation2 + $0x10] sm:$0xff]
    %v87 = vld [vmem:[#allocation2 + $0x18] sm:$0xff]
    %v88 = vld [vmem:[#allocation2 + $0x20] sm:$0xff]
    %v89 = vld [vmem:[#allocation2 + $0x28] sm:$0xff]
    %v90 = vld [vmem:[#allocation2 + $0x30] sm:$0xff]
    %v91 = vld [vmem:[#allocation2 + $0x38] sm:$0xff]
    %v92 = vld [vmem:[#allocation2 + $0x40] sm:$0xff]
    %v93 = vld [vmem:[#allocation2 + $0x48] sm:$0xff]
    %v94 = vld [vmem:[#allocation2 + $0x50] sm:$0xff]
    %v95 = vld [vmem:[#allocation2 + $0x58] sm:$0xff]
    %v96 = vld [vmem:[#allocation2 + $0x60] sm:$0xff]
    %v97 = vld [vmem:[#allocation2 + $0x68] sm:$0xff]
    %v98 = vld [vmem:[#allocation2 + $0x70] sm:$0xff]
    %v99 = vld [vmem:[#allocation2 + $0x78] sm:$0xff]
    %v100 = vld [vmem:[#allocation2 + $0x80] sm:$0xff]
    %v101 = vld [vmem:[#allocation2 + $0x88] sm:$0xff]
    %v102 = vld [vmem:[#allocation2 + $0x90] sm:$0xff]
    %v103 = vld [vmem:[#allocation2 + $0x98] sm:$0xff]
    %v104 = vld [vmem:[#allocation2 + $0xa0] sm:$0xff]
    %v105 = vld [vmem:[#allocation2 + $0xa8] sm:$0xff]
    %v106 = vld [vmem:[#allocation2 + $0xb0] sm:$0xff]
    %v107 = vld [vmem:[#allocation2 + $0xb8] sm:$0xff]
    %v108 = vld [vmem:[#allocation2 + $0xc0] sm:$0xff]
    %v109 = vld [vmem:[#allocation2 + $0xc8] sm:$0xff]
    %v110 = vld [vmem:[#allocation2 + $0xd0] sm:$0xff]
    %v111 = vld [vmem:[#allocation2 + $0xd8] sm:$0xff]
    %v112 = vld [vmem:[#allocation2 + $0xe0] sm:$0xff]
    %v113 = vld [vmem:[#allocation2 + $0xe8] sm:$0xff]
    %v114 = vld [vmem:[#allocation2 + $0xf0] sm:$0xff]
    %v115 = vld [vmem:[#allocation2 + $0xf8] sm:$0xff]
    %v116 = vld [vmem:[#allocation2 + $0x100] sm:$0xff]
    %v117 = vld [vmem:[#allocation2 + $0x108] sm:$0xff]
    %v118 = vld [vmem:[#allocation2 + $0x110] sm:$0xff]
    %v119 = vld [vmem:[#allocation2 + $0x118] sm:$0xff]
    %v120 = vld [vmem:[#allocation2 + $0x120] sm:$0xff]
    %v121 = vld [vmem:[#allocation2 + $0x128] sm:$0xff]
    %v122 = vld [vmem:[#allocation2 + $0x130] sm:$0xff]
    %v123 = vld [vmem:[#allocation2 + $0x138] sm:$0xff]
    %v124 = vld [vmem:[#allocation2 + $0x140] sm:$0xff]
    %v125 = vld [vmem:[#allocation2 + $0x148] sm:$0xff]
    %v126 = vld [vmem:[#allocation2 + $0x150] sm:$0xff]
    %v127 = vld [vmem:[#allocation2 + $0x158] sm:$0xff]
    %v128 = vld [vmem:[#allocation2 + $0x160] sm:$0xff]
    %v129 = vld [vmem:[#allocation2 + $0x168] sm:$0xff]
    %v130 = vld [vmem:[#allocation2 + $0x170] sm:$0xff]
    %v131 = vld [vmem:[#allocation2 + $0x178] sm:$0xff]
    %v132 = vld [vmem:[#allocation2 + $0x180] sm:$0xff]
    %v133 = vld [vmem:[#allocation2 + $0x188] sm:$0xff]
    %v134 = vld [vmem:[#allocation2 + $0x190] sm:$0xff]
    %v135 = vld [vmem:[#allocation2 + $0x198] sm:$0xff]
    %v136 = vld [vmem:[#allocation2 + $0x1a0] sm:$0xff]
    %v137 = vld [vmem:[#allocation2 + $0x1a8] sm:$0xff]
    %v138 = vld [vmem:[#allocation2 + $0x1b0] sm:$0xff]
    %v139 = vld [vmem:[#allocation2 + $0x1b8] sm:$0xff]
    %v140 = vld [vmem:[#allocation2 + $0x1c0] sm:$0xff]
    %v141 = vld [vmem:[#allocation2 + $0x1c8] sm:$0xff]
    %v142 = vld [vmem:[#allocation2 + $0x1d0] sm:$0xff]
    %v143 = vld [vmem:[#allocation2 + $0x1d8] sm:$0xff]
    %v144 = vld [vmem:[#allocation2 + $0x1e0] sm:$0xff]
    %v145 = vld [vmem:[#allocation2 + $0x1e8] sm:$0xff]
    %v146 = vld [vmem:[#allocation2 + $0x1f0] sm:$0xff]
    %v147 = vld [vmem:[#allocation2 + $0x1f8] sm:$0xff]
    %v148 = vld [vmem:[%s0] sm:$0xf]
    %v149 = vld [vmem:[%s0 + $0x4] sm:$0xf]
    %v150 = vld [vmem:[%s0 + $0x8] sm:$0xf]
    %v151 = vld [vmem:[%s0 + $0xc] sm:$0xf]
    %v152 = vld [vmem:[%s0 + $0x10] sm:$0xf]
    %v153 = vld [vmem:[%s0 + $0x14] sm:$0xf]
    %v154 = vld [vmem:[%s0 + $0x18] sm:$0xf]
    %v155 = vld [vmem:[%s0 + $0x1c] sm:$0xf]
    %v156 = vld [vmem:[%s0 + $0x20] sm:$0xf]
    %v157 = vld [vmem:[%s0 + $0x24] sm:$0xf]
    %v158 = vld [vmem:[%s0 + $0x28] sm:$0xf]
    %v159 = vld [vmem:[%s0 + $0x2c] sm:$0xf]
    %v160 = vld [vmem:[%s0 + $0x30] sm:$0xf]
    %v161 = vld [vmem:[%s0 + $0x34] sm:$0xf]
    %v162 = vld [vmem:[%s0 + $0x38] sm:$0xf]
    %v163 = vld [vmem:[%s0 + $0x3c] sm:$0xf]
    %v164 = vld [vmem:[%s0 + $0x40] sm:$0xf]
    %v165 = vld [vmem:[%s0 + $0x44] sm:$0xf]
    %v166 = vld [vmem:[%s0 + $0x48] sm:$0xf]
    %v167 = vld [vmem:[%s0 + $0x4c] sm:$0xf]
    %v168 = vld [vmem:[%s0 + $0x50] sm:$0xf]
    %v169 = vld [vmem:[%s0 + $0x54] sm:$0xf]
    %v170 = vld [vmem:[%s0 + $0x58] sm:$0xf]
    %v171 = vld [vmem:[%s0 + $0x5c] sm:$0xf]
    %v172 = vld [vmem:[%s0 + $0x60] sm:$0xf]
    %v173 = vld [vmem:[%s0 + $0x64] sm:$0xf]
    %v174 = vld [vmem:[%s0 + $0x68] sm:$0xf]
    %v175 = vld [vmem:[%s0 + $0x6c] sm:$0xf]
    %v176 = vld [vmem:[%s0 + $0x70] sm:$0xf]
    %v177 = vld [vmem:[%s0 + $0x74] sm:$0xf]
    %v178 = vld [vmem:[%s0 + $0x78] sm:$0xf]
    %v179 = vld [vmem:[%s0 + $0x7c] sm:$0xf]
    %v180 = vld [vmem:[%s0 + $0x80] sm:$0xf]
    %v181 = vld [vmem:[%s0 + $0x84] sm:$0xf]
    %v182 = vld [vmem:[%s0 + $0x88] sm:$0xf]
    %v183 = vld [vmem:[%s0 + $0x8c] sm:$0xf]
    %v184 = vld [vmem:[%s0 + $0x90] sm:$0xf]
    %v185 = vld [vmem:[%s0 + $0x94] sm:$0xf]
    %v186 = vld [vmem:[%s0 + $0x98] sm:$0xf]
    %v187 = vld [vmem:[%s0 + $0x9c] sm:$0xf]
    %v188 = vld [vmem:[%s0 + $0xa0] sm:$0xf]
    %v189 = vld [vmem:[%s0 + $0xa4] sm:$0xf]
    %v190 = vld [vmem:[%s0 + $0xa8] sm:$0xf]
    %v191 = vld [vmem:[%s0 + $0xac] sm:$0xf]
    %v192 = vld [vmem:[%s0 + $0xb0] sm:$0xf]
    %v193 = vld [vmem:[%s0 + $0xb4] sm:$0xf]
    %v194 = vld [vmem:[%s0 + $0xb8] sm:$0xf]
    %v195 = vld [vmem:[%s0 + $0xbc] sm:$0xf]
    %v196 = vld [vmem:[%s0 + $0xc0] sm:$0xf]
    %v197 = vld [vmem:[%s0 + $0xc4] sm:$0xf]
    %v198 = vld [vmem:[%s0 + $0xc8] sm:$0xf]
    %v199 = vld [vmem:[%s0 + $0xcc] sm:$0xf]
    %v200 = vld [vmem:[%s0 + $0xd0] sm:$0xf]
    %v201 = vld [vmem:[%s0 + $0xd4] sm:$0xf]
    %v202 = vld [vmem:[%s0 + $0xd8] sm:$0xf]
    %v203 = vld [vmem:[%s0 + $0xdc] sm:$0xf]
    %v204 = vld [vmem:[%s0 + $0xe0] sm:$0xf]
    %v205 = vld [vmem:[%s0 + $0xe4] sm:$0xf]
    %v206 = vld [vmem:[%s0 + $0xe8] sm:$0xf]
    %v207 = vld [vmem:[%s0 + $0xec] sm:$0xf]
    %v208 = vld [vmem:[%s0 + $0xf0] sm:$0xf]
    %v209 = vld [vmem:[%s0 + $0xf4] sm:$0xf]
    %v210 = vld [vmem:[%s0 + $0xf8] sm:$0xf]
    %v211 = vld [vmem:[%s0 + $0xfc] sm:$0xf]
    %v212 = vld [vmem:[%s1] sm:$0x3]
    %v277 = vunpack.c.l.b16 %v148
    %v278 = vunpack.c.l.b16 %v149
    %v279 = vunpack.c.l.b16 %v150
    %v280 = vunpack.c.l.b16 %v151
    %v281 = vunpack.c.l.b16 %v152
    %v282 = vunpack.c.l.b16 %v153
    %v283 = vunpack.c.l.b16 %v154
    %v284 = vunpack.c.l.b16 %v155
    %v285 = vunpack.c.l.b16 %v156
    %v286 = vunpack.c.l.b16 %v157
    %v287 = vunpack.c.l.b16 %v158
    %v288 = vunpack.c.l.b16 %v159
    %v289 = vunpack.c.l.b16 %v160
    %v290 = vunpack.c.l.b16 %v161
    %v291 = vunpack.c.l.b16 %v162
    %v292 = vunpack.c.l.b16 %v163
    %v293 = vunpack.c.l.b16 %v164
    %v294 = vunpack.c.l.b16 %v165
    %v295 = vunpack.c.l.b16 %v166
    %v296 = vunpack.c.l.b16 %v167
    %v297 = vunpack.c.l.b16 %v168
    %v298 = vunpack.c.l.b16 %v169
    %v299 = vunpack.c.l.b16 %v170
    %v300 = vunpack.c.l.b16 %v171
    %v301 = vunpack.c.l.b16 %v172
    %v302 = vunpack.c.l.b16 %v173
    %v303 = vunpack.c.l.b16 %v174
    %v304 = vunpack.c.l.b16 %v175
    %v305 = vunpack.c.l.b16 %v176
    %v306 = vunpack.c.l.b16 %v177
    %v307 = vunpack.c.l.b16 %v178
    %v308 = vunpack.c.l.b16 %v179
    %v309 = vunpack.c.l.b16 %v180
    %v310 = vunpack.c.l.b16 %v181
    %v311 = vunpack.c.l.b16 %v182
    %v312 = vunpack.c.l.b16 %v183
    %v313 = vunpack.c.l.b16 %v184
    %v314 = vunpack.c.l.b16 %v185
    %v315 = vunpack.c.l.b16 %v186
    %v316 = vunpack.c.l.b16 %v187
    %v317 = vunpack.c.l.b16 %v188
    %v318 = vunpack.c.l.b16 %v189
    %v319 = vunpack.c.l.b16 %v190
    %v320 = vunpack.c.l.b16 %v191
    %v321 = vunpack.c.l.b16 %v192
    %v322 = vunpack.c.l.b16 %v193
    %v323 = vunpack.c.l.b16 %v194
    %v324 = vunpack.c.l.b16 %v195
    %v325 = vunpack.c.l.b16 %v196
    %v326 = vunpack.c.l.b16 %v197
    %v327 = vunpack.c.l.b16 %v198
    %v328 = vunpack.c.l.b16 %v199
    %v329 = vunpack.c.l.b16 %v200
    %v330 = vunpack.c.l.b16 %v201
    %v331 = vunpack.c.l.b16 %v202
    %v332 = vunpack.c.l.b16 %v203
    %v333 = vunpack.c.l.b16 %v204
    %v334 = vunpack.c.l.b16 %v205
    %v335 = vunpack.c.l.b16 %v206
    %v336 = vunpack.c.l.b16 %v207
    %v337 = vunpack.c.l.b16 %v208
    %v338 = vunpack.c.l.b16 %v209
    %v339 = vunpack.c.l.b16 %v210
    %v340 = vunpack.c.l.b16 %v211
    %v341 = vpack.c.b16 %v278, %v277
    %v342 = vpack.c.b16 %v280, %v279
    %v343 = vpack.c.b16 %v282, %v281
    %v344 = vpack.c.b16 %v284, %v283
    %v345 = vpack.c.b16 %v286, %v285
    %v346 = vpack.c.b16 %v288, %v287
    %v347 = vpack.c.b16 %v290, %v289
    %v348 = vpack.c.b16 %v292, %v291
    %v349 = vpack.c.b16 %v294, %v293
    %v350 = vpack.c.b16 %v296, %v295
    %v351 = vpack.c.b16 %v298, %v297
    %v352 = vpack.c.b16 %v300, %v299
    %v353 = vpack.c.b16 %v302, %v301
    %v354 = vpack.c.b16 %v304, %v303
    %v355 = vpack.c.b16 %v306, %v305
    %v356 = vpack.c.b16 %v308, %v307
    %v357 = vpack.c.b16 %v310, %v309
    %v358 = vpack.c.b16 %v312, %v311
    %v359 = vpack.c.b16 %v314, %v313
    %v360 = vpack.c.b16 %v316, %v315
    %v361 = vpack.c.b16 %v318, %v317
    %v362 = vpack.c.b16 %v320, %v319
    %v363 = vpack.c.b16 %v322, %v321
    %v364 = vpack.c.b16 %v324, %v323
    %v365 = vpack.c.b16 %v326, %v325
    %v366 = vpack.c.b16 %v328, %v327
    %v367 = vpack.c.b16 %v330, %v329
    %v368 = vpack.c.b16 %v332, %v331
    %v369 = vpack.c.b16 %v334, %v333
    %v370 = vpack.c.b16 %v336, %v335
    %v371 = vpack.c.b16 %v338, %v337
    %v372 = vpack.c.b16 %v340, %v339
    %vm373 = vcmask 31744
    %v375 = vsel %vm373, %v341, 0
    %v378 = vsel %vm373, %v342, 0
    %v381 = vsel %vm373, %v343, 0
    %v384 = vsel %vm373, %v344, 0
    %v387 = vsel %vm373, %v345, 0
    %v390 = vsel %vm373, %v346, 0
    %v393 = vsel %vm373, %v347, 0
    %v396 = vsel %vm373, %v348, 0
    %v399 = vsel %vm373, %v349, 0
    %v402 = vsel %vm373, %v350, 0
    %v405 = vsel %vm373, %v351, 0
    %v408 = vsel %vm373, %v352, 0
    %v411 = vsel %vm373, %v353, 0
    %v414 = vsel %vm373, %v354, 0
    %v417 = vsel %vm373, %v355, 0
    %v420 = vsel %vm373, %v356, 0
    %v423 = vsel %vm373, %v357, 0
    %v426 = vsel %vm373, %v358, 0
    %v429 = vsel %vm373, %v359, 0
    %v432 = vsel %vm373, %v360, 0
    %v435 = vsel %vm373, %v361, 0
    %v438 = vsel %vm373, %v362, 0
    %v441 = vsel %vm373, %v363, 0
    %v444 = vsel %vm373, %v364, 0
    %v447 = vsel %vm373, %v365, 0
    %v450 = vsel %vm373, %v366, 0
    %v453 = vsel %vm373, %v367, 0
    %v456 = vsel %vm373, %v368, 0
    %v459 = vsel %vm373, %v369, 0
    %v462 = vsel %vm373, %v370, 0
    %v465 = vsel %vm373, %v371, 0
    %v468 = vsel %vm373, %v372, 0
    %vm470 = vcmask 1041408
    %v472 = vsel %vm470, %v212, 0
    %474 = vmatpush.bf16.msra.mxu0 0
    %475 = vmatpush.bf16.msra.mxu0 0
    %476 = vmatpush.bf16.msra.mxu0 0
    %477 = vmatpush.bf16.msra.mxu0 0
    %478 = vmatpush.bf16.msra.mxu0 0
    %479 = vmatpush.bf16.msra.mxu0 0
    %480 = vmatpush.bf16.msra.mxu0 0
    %481 = vmatpush.bf16.msra.mxu0 %v472
    %482 = vmatmul.bf16.gmra.mxu0 %v375
    %v483 = vpop.f32.mrf.mxu0
    %v484 = vadd.f32 0.0, %v483
    %v485 = vpop.f32.mrf.mxu0
    %v486 = vadd.f32 0.0, %v485
    %487 = vmatmul.bf16.gmra.mxu0 %v378
    %v488 = vpop.f32.mrf.mxu0
    %v489 = vadd.f32 0.0, %v488
    %v490 = vpop.f32.mrf.mxu0
    %v491 = vadd.f32 0.0, %v490
    %492 = vmatmul.bf16.gmra.mxu0 %v381
    %v493 = vpop.f32.mrf.mxu0
    %v494 = vadd.f32 0.0, %v493
    %v495 = vpop.f32.mrf.mxu0
    %v496 = vadd.f32 0.0, %v495
    %497 = vmatmul.bf16.gmra.mxu0 %v384
    %v498 = vpop.f32.mrf.mxu0
    %v499 = vadd.f32 0.0, %v498
    %v500 = vpop.f32.mrf.mxu0
    %v501 = vadd.f32 0.0, %v500
    %502 = vmatmul.bf16.gmra.mxu0 %v387
    %v503 = vpop.f32.mrf.mxu0
    %v504 = vadd.f32 0.0, %v503
    %v505 = vpop.f32.mrf.mxu0
    %v506 = vadd.f32 0.0, %v505
    %507 = vmatmul.bf16.gmra.mxu0 %v390
    %v508 = vpop.f32.mrf.mxu0
    %v509 = vadd.f32 0.0, %v508
    %v510 = vpop.f32.mrf.mxu0
    %v511 = vadd.f32 0.0, %v510
    %512 = vmatmul.bf16.gmra.mxu0 %v393
    %v513 = vpop.f32.mrf.mxu0
    %v514 = vadd.f32 0.0, %v513
    %v515 = vpop.f32.mrf.mxu0
    %v516 = vadd.f32 0.0, %v515
    %517 = vmatmul.bf16.gmra.mxu0 %v396
    %v518 = vpop.f32.mrf.mxu0
    %v519 = vadd.f32 0.0, %v518
    %v520 = vpop.f32.mrf.mxu0
    %v521 = vadd.f32 0.0, %v520
    %522 = vmatmul.bf16.gmra.mxu0 %v399
    %v523 = vpop.f32.mrf.mxu0
    %v524 = vadd.f32 0.0, %v523
    %v525 = vpop.f32.mrf.mxu0
    %v526 = vadd.f32 0.0, %v525
    %527 = vmatmul.bf16.gmra.mxu0 %v402
    %v528 = vpop.f32.mrf.mxu0
    %v529 = vadd.f32 0.0, %v528
    %v530 = vpop.f32.mrf.mxu0
    %v531 = vadd.f32 0.0, %v530
    %532 = vmatmul.bf16.gmra.mxu0 %v405
    %v533 = vpop.f32.mrf.mxu0
    %v534 = vadd.f32 0.0, %v533
    %v535 = vpop.f32.mrf.mxu0
    %v536 = vadd.f32 0.0, %v535
    %537 = vmatmul.bf16.gmra.mxu0 %v408
    %v538 = vpop.f32.mrf.mxu0
    %v539 = vadd.f32 0.0, %v538
    %v540 = vpop.f32.mrf.mxu0
    %v541 = vadd.f32 0.0, %v540
    %542 = vmatmul.bf16.gmra.mxu0 %v411
    %v543 = vpop.f32.mrf.mxu0
    %v544 = vadd.f32 0.0, %v543
    %v545 = vpop.f32.mrf.mxu0
    %v546 = vadd.f32 0.0, %v545
    %547 = vmatmul.bf16.gmra.mxu0 %v414
    %v548 = vpop.f32.mrf.mxu0
    %v549 = vadd.f32 0.0, %v548
    %v550 = vpop.f32.mrf.mxu0
    %v551 = vadd.f32 0.0, %v550
    %552 = vmatmul.bf16.gmra.mxu0 %v417
    %v553 = vpop.f32.mrf.mxu0
    %v554 = vadd.f32 0.0, %v553
    %v555 = vpop.f32.mrf.mxu0
    %v556 = vadd.f32 0.0, %v555
    %557 = vmatmul.bf16.gmra.mxu0 %v420
    %v558 = vpop.f32.mrf.mxu0
    %v559 = vadd.f32 0.0, %v558
    %v560 = vpop.f32.mrf.mxu0
    %v561 = vadd.f32 0.0, %v560
    %562 = vmatmul.bf16.gmra.mxu0 %v423
    %v563 = vpop.f32.mrf.mxu0
    %v564 = vadd.f32 0.0, %v563
    %v565 = vpop.f32.mrf.mxu0
    %v566 = vadd.f32 0.0, %v565
    %567 = vmatmul.bf16.gmra.mxu0 %v426
    %v568 = vpop.f32.mrf.mxu0
    %v569 = vadd.f32 0.0, %v568
    %v570 = vpop.f32.mrf.mxu0
    %v571 = vadd.f32 0.0, %v570
    %572 = vmatmul.bf16.gmra.mxu0 %v429
    %v573 = vpop.f32.mrf.mxu0
    %v574 = vadd.f32 0.0, %v573
    %v575 = vpop.f32.mrf.mxu0
    %v576 = vadd.f32 0.0, %v575
    %577 = vmatmul.bf16.gmra.mxu0 %v432
    %v578 = vpop.f32.mrf.mxu0
    %v579 = vadd.f32 0.0, %v578
    %v580 = vpop.f32.mrf.mxu0
    %v581 = vadd.f32 0.0, %v580
    %582 = vmatmul.bf16.gmra.mxu0 %v435
    %v583 = vpop.f32.mrf.mxu0
    %v584 = vadd.f32 0.0, %v583
    %v585 = vpop.f32.mrf.mxu0
    %v586 = vadd.f32 0.0, %v585
    %587 = vmatmul.bf16.gmra.mxu0 %v438
    %v588 = vpop.f32.mrf.mxu0
    %v589 = vadd.f32 0.0, %v588
    %v590 = vpop.f32.mrf.mxu0
    %v591 = vadd.f32 0.0, %v590
    %592 = vmatmul.bf16.gmra.mxu0 %v441
    %v593 = vpop.f32.mrf.mxu0
    %v594 = vadd.f32 0.0, %v593
    %v595 = vpop.f32.mrf.mxu0
    %v596 = vadd.f32 0.0, %v595
    %597 = vmatmul.bf16.gmra.mxu0 %v444
    %v598 = vpop.f32.mrf.mxu0
    %v599 = vadd.f32 0.0, %v598
    %v600 = vpop.f32.mrf.mxu0
    %v601 = vadd.f32 0.0, %v600
    %602 = vmatmul.bf16.gmra.mxu0 %v447
    %v603 = vpop.f32.mrf.mxu0
    %v604 = vadd.f32 0.0, %v603
    %v605 = vpop.f32.mrf.mxu0
    %v606 = vadd.f32 0.0, %v605
    %607 = vmatmul.bf16.gmra.mxu0 %v450
    %v608 = vpop.f32.mrf.mxu0
    %v609 = vadd.f32 0.0, %v608
    %v610 = vpop.f32.mrf.mxu0
    %v611 = vadd.f32 0.0, %v610
    %612 = vmatmul.bf16.gmra.mxu0 %v453
    %v613 = vpop.f32.mrf.mxu0
    %v614 = vadd.f32 0.0, %v613
    %v615 = vpop.f32.mrf.mxu0
    %v616 = vadd.f32 0.0, %v615
    %617 = vmatmul.bf16.gmra.mxu0 %v456
    %v618 = vpop.f32.mrf.mxu0
    %v619 = vadd.f32 0.0, %v618
    %v620 = vpop.f32.mrf.mxu0
    %v621 = vadd.f32 0.0, %v620
    %622 = vmatmul.bf16.gmra.mxu0 %v459
    %v623 = vpop.f32.mrf.mxu0
    %v624 = vadd.f32 0.0, %v623
    %v625 = vpop.f32.mrf.mxu0
    %v626 = vadd.f32 0.0, %v625
    %627 = vmatmul.bf16.gmra.mxu0 %v462
    %v628 = vpop.f32.mrf.mxu0
    %v629 = vadd.f32 0.0, %v628
    %v630 = vpop.f32.mrf.mxu0
    %v631 = vadd.f32 0.0, %v630
    %632 = vmatmul.bf16.gmra.mxu0 %v465
    %v633 = vpop.f32.mrf.mxu0
    %v634 = vadd.f32 0.0, %v633
    %v635 = vpop.f32.mrf.mxu0
    %v636 = vadd.f32 0.0, %v635
    %637 = vmatmul.bf16.gmra.mxu0 %v468
    %v638 = vpop.f32.mrf.mxu0
    %v639 = vadd.f32 0.0, %v638
    %v640 = vpop.f32.mrf.mxu0
    %v641 = vadd.f32 0.0, %v640
    %642 = vdwg.mxu0
    %v643 = vadd.f32 %v84, %v484
    %v644 = vadd.f32 %v85, %v486
    %v645 = vadd.f32 %v86, %v489
    %v646 = vadd.f32 %v87, %v491
    %v647 = vadd.f32 %v88, %v494
    %v648 = vadd.f32 %v89, %v496
    %v649 = vadd.f32 %v90, %v499
    %v650 = vadd.f32 %v91, %v501
    %v651 = vadd.f32 %v92, %v504
    %v652 = vadd.f32 %v93, %v506
    %v653 = vadd.f32 %v94, %v509
    %v654 = vadd.f32 %v95, %v511
    %v655 = vadd.f32 %v96, %v514
    %v656 = vadd.f32 %v97, %v516
    %v657 = vadd.f32 %v98, %v519
    %v658 = vadd.f32 %v99, %v521
    %v659 = vadd.f32 %v100, %v524
    %v660 = vadd.f32 %v101, %v526
    %v661 = vadd.f32 %v102, %v529
    %v662 = vadd.f32 %v103, %v531
    %v663 = vadd.f32 %v104, %v534
    %v664 = vadd.f32 %v105, %v536
    %v665 = vadd.f32 %v106, %v539
    %v666 = vadd.f32 %v107, %v541
    %v667 = vadd.f32 %v108, %v544
    %v668 = vadd.f32 %v109, %v546
    %v669 = vadd.f32 %v110, %v549
    %v670 = vadd.f32 %v111, %v551
    %v671 = vadd.f32 %v112, %v554
    %v672 = vadd.f32 %v113, %v556
    %v673 = vadd.f32 %v114, %v559
    %v674 = vadd.f32 %v115, %v561
    %v675 = vadd.f32 %v116, %v564
    %v676 = vadd.f32 %v117, %v566
    %v677 = vadd.f32 %v118, %v569
    %v678 = vadd.f32 %v119, %v571
    %v679 = vadd.f32 %v120, %v574
    %v680 = vadd.f32 %v121, %v576
    %v681 = vadd.f32 %v122, %v579
    %v682 = vadd.f32 %v123, %v581
    %v683 = vadd.f32 %v124, %v584
    %v684 = vadd.f32 %v125, %v586
    %v685 = vadd.f32 %v126, %v589
    %v686 = vadd.f32 %v127, %v591
    %v687 = vadd.f32 %v128, %v594
    %v688 = vadd.f32 %v129, %v596
    %v689 = vadd.f32 %v130, %v599
    %v690 = vadd.f32 %v131, %v601
    %v691 = vadd.f32 %v132, %v604
    %v692 = vadd.f32 %v133, %v606
    %v693 = vadd.f32 %v134, %v609
    %v694 = vadd.f32 %v135, %v611
    %v695 = vadd.f32 %v136, %v614
    %v696 = vadd.f32 %v137, %v616
    %v697 = vadd.f32 %v138, %v619
    %v698 = vadd.f32 %v139, %v621
    %v699 = vadd.f32 %v140, %v624
    %v700 = vadd.f32 %v141, %v626
    %v701 = vadd.f32 %v142, %v629
    %v702 = vadd.f32 %v143, %v631
    %v703 = vadd.f32 %v144, %v634
    %v704 = vadd.f32 %v145, %v636
    %v705 = vadd.f32 %v146, %v639
    %v706 = vadd.f32 %v147, %v641
    %707 = vst [vmem:[#allocation2] sm:$0xff] %v643
    %708 = vst [vmem:[#allocation2 + $0x8] sm:$0xff] %v644
    %709 = vst [vmem:[#allocation2 + $0x10] sm:$0xff] %v645
    %710 = vst [vmem:[#allocation2 + $0x18] sm:$0xff] %v646
    %711 = vst [vmem:[#allocation2 + $0x20] sm:$0xff] %v647
    %712 = vst [vmem:[#allocation2 + $0x28] sm:$0xff] %v648
    %713 = vst [vmem:[#allocation2 + $0x30] sm:$0xff] %v649
    %714 = vst [vmem:[#allocation2 + $0x38] sm:$0xff] %v650
    %715 = vst [vmem:[#allocation2 + $0x40] sm:$0xff] %v651
    %716 = vst [vmem:[#allocation2 + $0x48] sm:$0xff] %v652
    %717 = vst [vmem:[#allocation2 + $0x50] sm:$0xff] %v653
    %718 = vst [vmem:[#allocation2 + $0x58] sm:$0xff] %v654
    %719 = vst [vmem:[#allocation2 + $0x60] sm:$0xff] %v655
    %720 = vst [vmem:[#allocation2 + $0x68] sm:$0xff] %v656
    %721 = vst [vmem:[#allocation2 + $0x70] sm:$0xff] %v657
    %722 = vst [vmem:[#allocation2 + $0x78] sm:$0xff] %v658
    %723 = vst [vmem:[#allocation2 + $0x80] sm:$0xff] %v659
    %724 = vst [vmem:[#allocation2 + $0x88] sm:$0xff] %v660
    %725 = vst [vmem:[#allocation2 + $0x90] sm:$0xff] %v661
    %726 = vst [vmem:[#allocation2 + $0x98] sm:$0xff] %v662
    %727 = vst [vmem:[#allocation2 + $0xa0] sm:$0xff] %v663
    %728 = vst [vmem:[#allocation2 + $0xa8] sm:$0xff] %v664
    %729 = vst [vmem:[#allocation2 + $0xb0] sm:$0xff] %v665
    %730 = vst [vmem:[#allocation2 + $0xb8] sm:$0xff] %v666
    %731 = vst [vmem:[#allocation2 + $0xc0] sm:$0xff] %v667
    %732 = vst [vmem:[#allocation2 + $0xc8] sm:$0xff] %v668
    %733 = vst [vmem:[#allocation2 + $0xd0] sm:$0xff] %v669
    %734 = vst [vmem:[#allocation2 + $0xd8] sm:$0xff] %v670
    %735 = vst [vmem:[#allocation2 + $0xe0] sm:$0xff] %v671
    %736 = vst [vmem:[#allocation2 + $0xe8] sm:$0xff] %v672
    %737 = vst [vmem:[#allocation2 + $0xf0] sm:$0xff] %v673
    %738 = vst [vmem:[#allocation2 + $0xf8] sm:$0xff] %v674
    %739 = vst [vmem:[#allocation2 + $0x100] sm:$0xff] %v675
    %740 = vst [vmem:[#allocation2 + $0x108] sm:$0xff] %v676
    %741 = vst [vmem:[#allocation2 + $0x110] sm:$0xff] %v677
    %742 = vst [vmem:[#allocation2 + $0x118] sm:$0xff] %v678
    %743 = vst [vmem:[#allocation2 + $0x120] sm:$0xff] %v679
    %744 = vst [vmem:[#allocation2 + $0x128] sm:$0xff] %v680
    %745 = vst [vmem:[#allocation2 + $0x130] sm:$0xff] %v681
    %746 = vst [vmem:[#allocation2 + $0x138] sm:$0xff] %v682
    %747 = vst [vmem:[#allocation2 + $0x140] sm:$0xff] %v683
    %748 = vst [vmem:[#allocation2 + $0x148] sm:$0xff] %v684
    %749 = vst [vmem:[#allocation2 + $0x150] sm:$0xff] %v685
    %750 = vst [vmem:[#allocation2 + $0x158] sm:$0xff] %v686
    %751 = vst [vmem:[#allocation2 + $0x160] sm:$0xff] %v687
    %752 = vst [vmem:[#allocation2 + $0x168] sm:$0xff] %v688
    %753 = vst [vmem:[#allocation2 + $0x170] sm:$0xff] %v689
    %754 = vst [vmem:[#allocation2 + $0x178] sm:$0xff] %v690
    %755 = vst [vmem:[#allocation2 + $0x180] sm:$0xff] %v691
    %756 = vst [vmem:[#allocation2 + $0x188] sm:$0xff] %v692
    %757 = vst [vmem:[#allocation2 + $0x190] sm:$0xff] %v693
    %758 = vst [vmem:[#allocation2 + $0x198] sm:$0xff] %v694
    %759 = vst [vmem:[#allocation2 + $0x1a0] sm:$0xff] %v695
    %760 = vst [vmem:[#allocation2 + $0x1a8] sm:$0xff] %v696
    %761 = vst [vmem:[#allocation2 + $0x1b0] sm:$0xff] %v697
    %762 = vst [vmem:[#allocation2 + $0x1b8] sm:$0xff] %v698
    %763 = vst [vmem:[#allocation2 + $0x1c0] sm:$0xff] %v699
    %764 = vst [vmem:[#allocation2 + $0x1c8] sm:$0xff] %v700
    %765 = vst [vmem:[#allocation2 + $0x1d0] sm:$0xff] %v701
    %766 = vst [vmem:[#allocation2 + $0x1d8] sm:$0xff] %v702
    %767 = vst [vmem:[#allocation2 + $0x1e0] sm:$0xff] %v703
    %768 = vst [vmem:[#allocation2 + $0x1e8] sm:$0xff] %v704
    %769 = vst [vmem:[#allocation2 + $0x1f0] sm:$0xff] %v705
    %770 = vst [vmem:[#allocation2 + $0x1f8] sm:$0xff] %v706
    // Predicated region
    $region18: #{tpu_custom_call.1} parent=1 // pred_check
      %p771 = pneg %p16
    $region19: #{tpu_custom_call.1} parent=1 // pred_check_branch
      %773 = sbr.rel (%p771) target = $region21
    $region20: #{tpu_custom_call.1} parent=1 // pred_region
      %v774 = vld [vmem:[#allocation2] sm:$0xff]
      %v775 = vld [vmem:[#allocation2 + $0x8] sm:$0xff]
      %v776 = vld [vmem:[#allocation2 + $0x10] sm:$0xff]
      %v777 = vld [vmem:[#allocation2 + $0x18] sm:$0xff]
      %v778 = vld [vmem:[#allocation2 + $0x20] sm:$0xff]
      %v779 = vld [vmem:[#allocation2 + $0x28] sm:$0xff]
      %v780 = vld [vmem:[#allocation2 + $0x30] sm:$0xff]
      %v781 = vld [vmem:[#allocation2 + $0x38] sm:$0xff]
      %v782 = vld [vmem:[#allocation2 + $0x40] sm:$0xff]
      %v783 = vld [vmem:[#allocation2 + $0x48] sm:$0xff]
      %v784 = vld [vmem:[#allocation2 + $0x50] sm:$0xff]
      %v785 = vld [vmem:[#allocation2 + $0x58] sm:$0xff]
      %v786 = vld [vmem:[#allocation2 + $0x60] sm:$0xff]
      %v787 = vld [vmem:[#allocation2 + $0x68] sm:$0xff]
      %v788 = vld [vmem:[#allocation2 + $0x70] sm:$0xff]
      %v789 = vld [vmem:[#allocation2 + $0x78] sm:$0xff]
      %v790 = vld [vmem:[#allocation2 + $0x80] sm:$0xff]
      %v791 = vld [vmem:[#allocation2 + $0x88] sm:$0xff]
      %v792 = vld [vmem:[#allocation2 + $0x90] sm:$0xff]
      %v793 = vld [vmem:[#allocation2 + $0x98] sm:$0xff]
      %v794 = vld [vmem:[#allocation2 + $0xa0] sm:$0xff]
      %v795 = vld [vmem:[#allocation2 + $0xa8] sm:$0xff]
      %v796 = vld [vmem:[#allocation2 + $0xb0] sm:$0xff]
      %v797 = vld [vmem:[#allocation2 + $0xb8] sm:$0xff]
      %v798 = vld [vmem:[#allocation2 + $0xc0] sm:$0xff]
      %v799 = vld [vmem:[#allocation2 + $0xc8] sm:$0xff]
      %v800 = vld [vmem:[#allocation2 + $0xd0] sm:$0xff]
      %v801 = vld [vmem:[#allocation2 + $0xd8] sm:$0xff]
      %v802 = vld [vmem:[#allocation2 + $0xe0] sm:$0xff]
      %v803 = vld [vmem:[#allocation2 + $0xe8] sm:$0xff]
      %v804 = vld [vmem:[#allocation2 + $0xf0] sm:$0xff]
      %v805 = vld [vmem:[#allocation2 + $0xf8] sm:$0xff]
      %v806 = vld [vmem:[#allocation2 + $0x100] sm:$0xff]
      %v807 = vld [vmem:[#allocation2 + $0x108] sm:$0xff]
      %v808 = vld [vmem:[#allocation2 + $0x110] sm:$0xff]
      %v809 = vld [vmem:[#allocation2 + $0x118] sm:$0xff]
      %v810 = vld [vmem:[#allocation2 + $0x120] sm:$0xff]
      %v811 = vld [vmem:[#allocation2 + $0x128] sm:$0xff]
      %v812 = vld [vmem:[#allocation2 + $0x130] sm:$0xff]
      %v813 = vld [vmem:[#allocation2 + $0x138] sm:$0xff]
      %v814 = vld [vmem:[#allocation2 + $0x140] sm:$0xff]
      %v815 = vld [vmem:[#allocation2 + $0x148] sm:$0xff]
      %v816 = vld [vmem:[#allocation2 + $0x150] sm:$0xff]
      %v817 = vld [vmem:[#allocation2 + $0x158] sm:$0xff]
      %v818 = vld [vmem:[#allocation2 + $0x160] sm:$0xff]
      %v819 = vld [vmem:[#allocation2 + $0x168] sm:$0xff]
      %v820 = vld [vmem:[#allocation2 + $0x170] sm:$0xff]
      %v821 = vld [vmem:[#allocation2 + $0x178] sm:$0xff]
      %v822 = vld [vmem:[#allocation2 + $0x180] sm:$0xff]
      %v823 = vld [vmem:[#allocation2 + $0x188] sm:$0xff]
      %v824 = vld [vmem:[#allocation2 + $0x190] sm:$0xff]
      %v825 = vld [vmem:[#allocation2 + $0x198] sm:$0xff]
      %v826 = vld [vmem:[#allocation2 + $0x1a0] sm:$0xff]
      %v827 = vld [vmem:[#allocation2 + $0x1a8] sm:$0xff]
      %v828 = vld [vmem:[#allocation2 + $0x1b0] sm:$0xff]
      %v829 = vld [vmem:[#allocation2 + $0x1b8] sm:$0xff]
      %v830 = vld [vmem:[#allocation2 + $0x1c0] sm:$0xff]
      %v831 = vld [vmem:[#allocation2 + $0x1c8] sm:$0xff]
      %v832 = vld [vmem:[#allocation2 + $0x1d0] sm:$0xff]
      %v833 = vld [vmem:[#allocation2 + $0x1d8] sm:$0xff]
      %v834 = vld [vmem:[#allocation2 + $0x1e0] sm:$0xff]
      %v835 = vld [vmem:[#allocation2 + $0x1e8] sm:$0xff]
      %v836 = vld [vmem:[#allocation2 + $0x1f0] sm:$0xff]
      %v837 = vld [vmem:[#allocation2 + $0x1f8] sm:$0xff]
      %v838 = vld [vmem:[%s2] sm:$0x1]
      %v840 = vperm.slane %v838, 0
      %v842 = vadd.f32 %v774, %v840
      %v843 = vadd.f32 %v775, %v840
      %v844 = vadd.f32 %v776, %v840
      %v845 = vadd.f32 %v777, %v840
      %v846 = vadd.f32 %v778, %v840
      %v847 = vadd.f32 %v779, %v840
      %v848 = vadd.f32 %v780, %v840
      %v849 = vadd.f32 %v781, %v840
      %v850 = vadd.f32 %v782, %v840
      %v851 = vadd.f32 %v783, %v840
      %v852 = vadd.f32 %v784, %v840
      %v853 = vadd.f32 %v785, %v840
      %v854 = vadd.f32 %v786, %v840
      %v855 = vadd.f32 %v787, %v840
      %v856 = vadd.f32 %v788, %v840
      %v857 = vadd.f32 %v789, %v840
      %v858 = vadd.f32 %v790, %v840
      %v859 = vadd.f32 %v791, %v840
      %v860 = vadd.f32 %v792, %v840
      %v861 = vadd.f32 %v793, %v840
      %v862 = vadd.f32 %v794, %v840
      %v863 = vadd.f32 %v795, %v840
      %v864 = vadd.f32 %v796, %v840
      %v865 = vadd.f32 %v797, %v840
      %v866 = vadd.f32 %v798, %v840
      %v867 = vadd.f32 %v799, %v840
      %v868 = vadd.f32 %v800, %v840
      %v869 = vadd.f32 %v801, %v840
      %v870 = vadd.f32 %v802, %v840
      %v871 = vadd.f32 %v803, %v840
      %v872 = vadd.f32 %v804, %v840
      %v873 = vadd.f32 %v805, %v840
      %v874 = vadd.f32 %v806, %v840
      %v875 = vadd.f32 %v807, %v840
      %v876 = vadd.f32 %v808, %v840
      %v877 = vadd.f32 %v809, %v840
      %v878 = vadd.f32 %v810, %v840
      %v879 = vadd.f32 %v811, %v840
      %v880 = vadd.f32 %v812, %v840
      %v881 = vadd.f32 %v813, %v840
      %v882 = vadd.f32 %v814, %v840
      %v883 = vadd.f32 %v815, %v840
      %v884 = vadd.f32 %v816, %v840
      %v885 = vadd.f32 %v817, %v840
      %v886 = vadd.f32 %v818, %v840
      %v887 = vadd.f32 %v819, %v840
      %v888 = vadd.f32 %v820, %v840
      %v889 = vadd.f32 %v821, %v840
      %v890 = vadd.f32 %v822, %v840
      %v891 = vadd.f32 %v823, %v840
      %v892 = vadd.f32 %v824, %v840
      %v893 = vadd.f32 %v825, %v840
      %v894 = vadd.f32 %v826, %v840
      %v895 = vadd.f32 %v827, %v840
      %v896 = vadd.f32 %v828, %v840
      %v897 = vadd.f32 %v829, %v840
      %v898 = vadd.f32 %v830, %v840
      %v899 = vadd.f32 %v831, %v840
      %v900 = vadd.f32 %v832, %v840
      %v901 = vadd.f32 %v833, %v840
      %v902 = vadd.f32 %v834, %v840
      %v903 = vadd.f32 %v835, %v840
      %v904 = vadd.f32 %v836, %v840
      %v905 = vadd.f32 %v837, %v840
      %v906 = vmax.f32 %v842, 0.0
      %v907 = vmax.f32 %v843, 0.0
      %v908 = vmax.f32 %v844, 0.0
      %v909 = vmax.f32 %v845, 0.0
      %v910 = vmax.f32 %v846, 0.0
      %v911 = vmax.f32 %v847, 0.0
      %v912 = vmax.f32 %v848, 0.0
      %v913 = vmax.f32 %v849, 0.0
      %v914 = vmax.f32 %v850, 0.0
      %v915 = vmax.f32 %v851, 0.0
      %v916 = vmax.f32 %v852, 0.0
      %v917 = vmax.f32 %v853, 0.0
      %v918 = vmax.f32 %v854, 0.0
      %v919 = vmax.f32 %v855, 0.0
      %v920 = vmax.f32 %v856, 0.0
      %v921 = vmax.f32 %v857, 0.0
      %v922 = vmax.f32 %v858, 0.0
      %v923 = vmax.f32 %v859, 0.0
      %v924 = vmax.f32 %v860, 0.0
      %v925 = vmax.f32 %v861, 0.0
      %v926 = vmax.f32 %v862, 0.0
      %v927 = vmax.f32 %v863, 0.0
      %v928 = vmax.f32 %v864, 0.0
      %v929 = vmax.f32 %v865, 0.0
      %v930 = vmax.f32 %v866, 0.0
      %v931 = vmax.f32 %v867, 0.0
      %v932 = vmax.f32 %v868, 0.0
      %v933 = vmax.f32 %v869, 0.0
      %v934 = vmax.f32 %v870, 0.0
      %v935 = vmax.f32 %v871, 0.0
      %v936 = vmax.f32 %v872, 0.0
      %v937 = vmax.f32 %v873, 0.0
      %v938 = vmax.f32 %v874, 0.0
      %v939 = vmax.f32 %v875, 0.0
      %v940 = vmax.f32 %v876, 0.0
      %v941 = vmax.f32 %v877, 0.0
      %v942 = vmax.f32 %v878, 0.0
      %v943 = vmax.f32 %v879, 0.0
      %v944 = vmax.f32 %v880, 0.0
      %v945 = vmax.f32 %v881, 0.0
      %v946 = vmax.f32 %v882, 0.0
      %v947 = vmax.f32 %v883, 0.0
      %v948 = vmax.f32 %v884, 0.0
      %v949 = vmax.f32 %v885, 0.0
      %v950 = vmax.f32 %v886, 0.0
      %v951 = vmax.f32 %v887, 0.0
      %v952 = vmax.f32 %v888, 0.0
      %v953 = vmax.f32 %v889, 0.0
      %v954 = vmax.f32 %v890, 0.0
      %v955 = vmax.f32 %v891, 0.0
      %v956 = vmax.f32 %v892, 0.0
      %v957 = vmax.f32 %v893, 0.0
      %v958 = vmax.f32 %v894, 0.0
      %v959 = vmax.f32 %v895, 0.0
      %v960 = vmax.f32 %v896, 0.0
      %v961 = vmax.f32 %v897, 0.0
      %v962 = vmax.f32 %v898, 0.0
      %v963 = vmax.f32 %v899, 0.0
      %v964 = vmax.f32 %v900, 0.0
      %v965 = vmax.f32 %v901, 0.0
      %v966 = vmax.f32 %v902, 0.0
      %v967 = vmax.f32 %v903, 0.0
      %v968 = vmax.f32 %v904, 0.0
      %v969 = vmax.f32 %v905, 0.0
      %v970 = vpack.c.bf16 %v906, %v906
      %v971 = vpack.c.bf16 %v907, %v907
      %v972 = vpack.c.bf16 %v908, %v908
      %v973 = vpack.c.bf16 %v909, %v909
      %v974 = vpack.c.bf16 %v910, %v910
      %v975 = vpack.c.bf16 %v911, %v911
      %v976 = vpack.c.bf16 %v912, %v912
      %v977 = vpack.c.bf16 %v913, %v913
      %v978 = vpack.c.bf16 %v914, %v914
      %v979 = vpack.c.bf16 %v915, %v915
      %v980 = vpack.c.bf16 %v916, %v916
      %v981 = vpack.c.bf16 %v917, %v917
      %v982 = vpack.c.bf16 %v918, %v918
      %v983 = vpack.c.bf16 %v919, %v919
      %v984 = vpack.c.bf16 %v920, %v920
      %v985 = vpack.c.bf16 %v921, %v921
      %v986 = vpack.c.bf16 %v922, %v922
      %v987 = vpack.c.bf16 %v923, %v923
      %v988 = vpack.c.bf16 %v924, %v924
      %v989 = vpack.c.bf16 %v925, %v925
      %v990 = vpack.c.bf16 %v926, %v926
      %v991 = vpack.c.bf16 %v927, %v927
      %v992 = vpack.c.bf16 %v928, %v928
      %v993 = vpack.c.bf16 %v929, %v929
      %v994 = vpack.c.bf16 %v930, %v930
      %v995 = vpack.c.bf16 %v931, %v931
      %v996 = vpack.c.bf16 %v932, %v932
      %v997 = vpack.c.bf16 %v933, %v933
      %v998 = vpack.c.bf16 %v934, %v934
      %v999 = vpack.c.bf16 %v935, %v935
      %v1000 = vpack.c.bf16 %v936, %v936
      %v1001 = vpack.c.bf16 %v937, %v937
      %v1002 = vpack.c.bf16 %v938, %v938
      %v1003 = vpack.c.bf16 %v939, %v939
      %v1004 = vpack.c.bf16 %v940, %v940
      %v1005 = vpack.c.bf16 %v941, %v941
      %v1006 = vpack.c.bf16 %v942, %v942
      %v1007 = vpack.c.bf16 %v943, %v943
      %v1008 = vpack.c.bf16 %v944, %v944
      %v1009 = vpack.c.bf16 %v945, %v945
      %v1010 = vpack.c.bf16 %v946, %v946
      %v1011 = vpack.c.bf16 %v947, %v947
      %v1012 = vpack.c.bf16 %v948, %v948
      %v1013 = vpack.c.bf16 %v949, %v949
      %v1014 = vpack.c.bf16 %v950, %v950
      %v1015 = vpack.c.bf16 %v951, %v951
      %v1016 = vpack.c.bf16 %v952, %v952
      %v1017 = vpack.c.bf16 %v953, %v953
      %v1018 = vpack.c.bf16 %v954, %v954
      %v1019 = vpack.c.bf16 %v955, %v955
      %v1020 = vpack.c.bf16 %v956, %v956
      %v1021 = vpack.c.bf16 %v957, %v957
      %v1022 = vpack.c.bf16 %v958, %v958
      %v1023 = vpack.c.bf16 %v959, %v959
      %v1024 = vpack.c.bf16 %v960, %v960
      %v1025 = vpack.c.bf16 %v961, %v961
      %v1026 = vpack.c.bf16 %v962, %v962
      %v1027 = vpack.c.bf16 %v963, %v963
      %v1028 = vpack.c.bf16 %v964, %v964
      %v1029 = vpack.c.bf16 %v965, %v965
      %v1030 = vpack.c.bf16 %v966, %v966
      %v1031 = vpack.c.bf16 %v967, %v967
      %v1032 = vpack.c.bf16 %v968, %v968
      %v1033 = vpack.c.bf16 %v969, %v969
      %1034 = vst [vmem:[#allocation3] sm:$0xf] %v970
      %1035 = vst [vmem:[#allocation3 + $0x4] sm:$0xf] %v971
      %1036 = vst [vmem:[#allocation3 + $0x8] sm:$0xf] %v972
      %1037 = vst [vmem:[#allocation3 + $0xc] sm:$0xf] %v973
      %1038 = vst [vmem:[#allocation3 + $0x10] sm:$0xf] %v974
      %1039 = vst [vmem:[#allocation3 + $0x14] sm:$0xf] %v975
      %1040 = vst [vmem:[#allocation3 + $0x18] sm:$0xf] %v976
      %1041 = vst [vmem:[#allocation3 + $0x1c] sm:$0xf] %v977
      %1042 = vst [vmem:[#allocation3 + $0x20] sm:$0xf] %v978
      %1043 = vst [vmem:[#allocation3 + $0x24] sm:$0xf] %v979
      %1044 = vst [vmem:[#allocation3 + $0x28] sm:$0xf] %v980
      %1045 = vst [vmem:[#allocation3 + $0x2c] sm:$0xf] %v981
      %1046 = vst [vmem:[#allocation3 + $0x30] sm:$0xf] %v982
      %1047 = vst [vmem:[#allocation3 + $0x34] sm:$0xf] %v983
      %1048 = vst [vmem:[#allocation3 + $0x38] sm:$0xf] %v984
      %1049 = vst [vmem:[#allocation3 + $0x3c] sm:$0xf] %v985
      %1050 = vst [vmem:[#allocation3 + $0x40] sm:$0xf] %v986
      %1051 = vst [vmem:[#allocation3 + $0x44] sm:$0xf] %v987
      %1052 = vst [vmem:[#allocation3 + $0x48] sm:$0xf] %v988
      %1053 = vst [vmem:[#allocation3 + $0x4c] sm:$0xf] %v989
      %1054 = vst [vmem:[#allocation3 + $0x50] sm:$0xf] %v990
      %1055 = vst [vmem:[#allocation3 + $0x54] sm:$0xf] %v991
      %1056 = vst [vmem:[#allocation3 + $0x58] sm:$0xf] %v992
      %1057 = vst [vmem:[#allocation3 + $0x5c] sm:$0xf] %v993
      %1058 = vst [vmem:[#allocation3 + $0x60] sm:$0xf] %v994
      %1059 = vst [vmem:[#allocation3 + $0x64] sm:$0xf] %v995
      %1060 = vst [vmem:[#allocation3 + $0x68] sm:$0xf] %v996
      %1061 = vst [vmem:[#allocation3 + $0x6c] sm:$0xf] %v997
      %1062 = vst [vmem:[#allocation3 + $0x70] sm:$0xf] %v998
      %1063 = vst [vmem:[#allocation3 + $0x74] sm:$0xf] %v999
      %1064 = vst [vmem:[#allocation3 + $0x78] sm:$0xf] %v1000
      %1065 = vst [vmem:[#allocation3 + $0x7c] sm:$0xf] %v1001
      %1066 = vst [vmem:[#allocation3 + $0x80] sm:$0xf] %v1002
      %1067 = vst [vmem:[#allocation3 + $0x84] sm:$0xf] %v1003
      %1068 = vst [vmem:[#allocation3 + $0x88] sm:$0xf] %v1004
      %1069 = vst [vmem:[#allocation3 + $0x8c] sm:$0xf] %v1005
      %1070 = vst [vmem:[#allocation3 + $0x90] sm:$0xf] %v1006
      %1071 = vst [vmem:[#allocation3 + $0x94] sm:$0xf] %v1007
      %1072 = vst [vmem:[#allocation3 + $0x98] sm:$0xf] %v1008
      %1073 = vst [vmem:[#allocation3 + $0x9c] sm:$0xf] %v1009
      %1074 = vst [vmem:[#allocation3 + $0xa0] sm:$0xf] %v1010
      %1075 = vst [vmem:[#allocation3 + $0xa4] sm:$0xf] %v1011
      %1076 = vst [vmem:[#allocation3 + $0xa8] sm:$0xf] %v1012
      %1077 = vst [vmem:[#allocation3 + $0xac] sm:$0xf] %v1013
      %1078 = vst [vmem:[#allocation3 + $0xb0] sm:$0xf] %v1014
      %1079 = vst [vmem:[#allocation3 + $0xb4] sm:$0xf] %v1015
      %1080 = vst [vmem:[#allocation3 + $0xb8] sm:$0xf] %v1016
      %1081 = vst [vmem:[#allocation3 + $0xbc] sm:$0xf] %v1017
      %1082 = vst [vmem:[#allocation3 + $0xc0] sm:$0xf] %v1018
      %1083 = vst [vmem:[#allocation3 + $0xc4] sm:$0xf] %v1019
      %1084 = vst [vmem:[#allocation3 + $0xc8] sm:$0xf] %v1020
      %1085 = vst [vmem:[#allocation3 + $0xcc] sm:$0xf] %v1021
      %1086 = vst [vmem:[#allocation3 + $0xd0] sm:$0xf] %v1022
      %1087 = vst [vmem:[#allocation3 + $0xd4] sm:$0xf] %v1023
      %1088 = vst [vmem:[#allocation3 + $0xd8] sm:$0xf] %v1024
      %1089 = vst [vmem:[#allocation3 + $0xdc] sm:$0xf] %v1025
      %1090 = vst [vmem:[#allocation3 + $0xe0] sm:$0xf] %v1026
      %1091 = vst [vmem:[#allocation3 + $0xe4] sm:$0xf] %v1027
      %1092 = vst [vmem:[#allocation3 + $0xe8] sm:$0xf] %v1028
      %1093 = vst [vmem:[#allocation3 + $0xec] sm:$0xf] %v1029
      %1094 = vst [vmem:[#allocation3 + $0xf0] sm:$0xf] %v1030
      %1095 = vst [vmem:[#allocation3 + $0xf4] sm:$0xf] %v1031
      %1096 = vst [vmem:[#allocation3 + $0xf8] sm:$0xf] %v1032
      %1097 = vst [vmem:[#allocation3 + $0xfc] sm:$0xf] %v1033
    $region21: #{tpu_custom_call.1} parent=1 // pred_fallthru
      _
    // Predicated region
    $region22: #{tpu_custom_call.1} parent=1 // pred_check
      _
    $region23: #{tpu_custom_call.1} parent=1 // pred_check_branch
      %1099 = sbr.rel (0) target = $region25
    $region24: #{tpu_custom_call.1} parent=1 // pred_region
      %1101 = vsyncadd [#allocation4], 0
      %s1102 = sshll.u32 [#allocation3], 4
      %s1103 = int_to_ptr.vmem [resolvable:$true] %s1102
      %s1104 = sshll.u32 %s3, 4
      %s1105 = int_to_ptr.hbm [resolvable:$true] %s1104
      %1110 = dma.vmem_to_hbm [thread:$0]  %s1103, 4096, %s1105, [#allocation4], 64, 64, 4
    $region25: #{tpu_custom_call.1} parent=1 // pred_fallthru
      _
    // Predicated region
    $region26: #{tpu_custom_call.1} parent=1 // pred_check
      _
    $region27: #{tpu_custom_call.1} parent=1 // pred_check_branch
      %1112 = sbr.rel (0) target = $region29
    $region28: #{tpu_custom_call.1} parent=1 // pred_region
      %1114 = dma.done [#allocation4], 4096
    $region29: #{tpu_custom_call.1} parent=1 // pred_fallthru
      _
    %1115 = vsyncpa [#allocation4], 1

</llo_original>
